<compile_context>
chip_gen: v5e
topology: v5e:2x2
jax: 0.10.0
libtpu: 0.0.40
codegen_flags: <defaults>
</compile_context>

<pallas_src>
import jax
import jax.numpy as jnp
from jax.experimental import pallas as pl
from jax.experimental.pallas import tpu as pltpu


def _dma_copy_kernel(*refs):
    """Start one HBM->HBM DMA per selected item, then wait on all of them."""
    k = (len(refs) - 1) // 2
    in_refs = refs[:k]
    out_refs = refs[k:2 * k]
    sem = refs[2 * k]
    copies = []
    for j in range(k):
        cp = pltpu.make_async_copy(in_refs[j], out_refs[j], sem.at[j])
        cp.start()
        copies.append(cp)
    for cp in copies:   # all DMAs in flight; now drain
        cp.wait()


def _fused_dma_copy(items):
    """Copy all items (heterogeneous shapes/dtypes) with a single pallas_call."""
    k = len(items)
    total_bytes = sum(int(it.size) * it.dtype.itemsize for it in items)
    any_spec = pl.BlockSpec(memory_space=pl.ANY)
    outs = pl.pallas_call(
        _dma_copy_kernel,
        out_shape=tuple(jax.ShapeDtypeStruct(it.shape, it.dtype) for it in items),
        in_specs=[any_spec] * k,
        out_specs=tuple(any_spec for _ in range(k)),
        scratch_shapes=[pltpu.SemaphoreType.DMA((k,))],
        cost_estimate=pl.CostEstimate(
            flops=0, transcendentals=0, bytes_accessed=2 * total_bytes),
    )(*items)
    return list(outs)


def _materialize(items):
    """Device-side materialization of the selected items via one fused DMA call."""
    results = list(items)
    positions, to_copy, orig_shapes = [], [], []
    for pos, it in enumerate(items):
        arr = jnp.asarray(it)
        if arr.size == 0:          # nothing to copy
            results[pos] = arr
            continue
        orig_shape = arr.shape
        if arr.ndim == 0:          # DMA wants at least rank-1; reshape is free
            arr = arr.reshape(1)
        positions.append(pos)
        to_copy.append(arr)
        orig_shapes.append(orig_shape)
    if to_copy:
        outs = _fused_dma_copy(to_copy)
        for pos, out, shape in zip(positions, outs, orig_shapes):
            results[pos] = out.reshape(shape)
    return results


class ExtractItems:
    """Pallas-backed ExtractItems: extracts multiple items from a tensor sequence by index."""

    def __init__(self, indexes):
        self.indexes = tuple(int(i) for i in indexes)

    def __call__(self, input):
        return self.forward(input)

    def forward(self, input):
        if isinstance(input, jnp.ndarray):
            return [input]
        if isinstance(input, (list, tuple)):
            # TODO(synk): the reference forward is pure Python list indexing (returns
            # aliased references, zero data movement); the Pallas kernel only implements
            # the device-side materialization (fresh copies) of the selected items.
            selected = [input[i] for i in self.indexes]
            return _materialize(selected)
        raise TypeError(
            f"[input] must be tensor, list, or tuple, got {type(input).__name__}.")


if __name__ == "__main__":
    key = jax.random.PRNGKey(0)
    keys = jax.random.split(key, 8)

    # A feature-pyramid-style sequence with mixed shapes and dtypes.
    small = [jax.random.normal(keys[i], (2, 4, 16, 16), dtype=jnp.float32)
             for i in range(4)]                                   # indices 0..3
    big = [jax.random.normal(keys[4 + i], (8, 32, 256), dtype=jnp.float32)
           for i in range(2)]                                     # indices 4..5
    bf = [jax.random.normal(keys[6], (4, 16, 128)).astype(jnp.bfloat16)]  # index 6
    seq = small + big + bf

    indexes = (5, 0, 6, 2)                                        # mixes all groups
    extractor = ExtractItems(indexes)

    outs = extractor(seq)
    outs = jax.block_until_ready(outs)

    assert len(outs) == len(indexes)
    for j, i in enumerate(indexes):
        assert outs[j].shape == seq[i].shape, (outs[j].shape, seq[i].shape)
        assert outs[j].dtype == seq[i].dtype, (outs[j].dtype, seq[i].dtype)
        assert bool(jnp.array_equal(outs[j], seq[i])), (j, i)

    # Single-tensor path: returns [input] unchanged.
    single = extractor(seq[1])
    assert len(single) == 1 and single[0] is seq[1]

    # TypeError path.
    try:
        extractor(123)
    except TypeError:
        pass
    else:
        raise AssertionError("expected TypeError for non-sequence input")

    print("KERNEL_OK")
</pallas_src>

<mosaic_0001>
module attributes {stable_mosaic.version = 11 : i64} {
  func.func @_dma_copy_kernel(%arg0: memref<8x32x256xf32, #tpu.memory_space<any>>, %arg1: memref<2x4x16x16xf32, #tpu.memory_space<any>>, %arg2: memref<4x16x128xbf16, #tpu.memory_space<any>>, %arg3: memref<2x4x16x16xf32, #tpu.memory_space<any>>, %arg4: memref<8x32x256xf32, #tpu.memory_space<any>>, %arg5: memref<2x4x16x16xf32, #tpu.memory_space<any>>, %arg6: memref<4x16x128xbf16, #tpu.memory_space<any>>, %arg7: memref<2x4x16x16xf32, #tpu.memory_space<any>>, %arg8: memref<4x!tpu.dma_semaphore, #tpu.memory_space<semaphore_mem>>) attributes {dimension_semantics = [], scalar_prefetch = 0 : i64, scratch_operands = 1 : i64, tpu.core_type = #tpu.core_type<tc>} {
    %c0_i32 = arith.constant 0 : i32
    %0 = tpu.memref_slice %arg8[%c0_i32] : memref<4x!tpu.dma_semaphore, #tpu.memory_space<semaphore_mem>> -> memref<1x!tpu.dma_semaphore, #tpu.memory_space<semaphore_mem>>
    %1 = tpu.memref_squeeze %0 : memref<1x!tpu.dma_semaphore, #tpu.memory_space<semaphore_mem>> -> memref<!tpu.dma_semaphore, #tpu.memory_space<semaphore_mem>>
    tpu.enqueue_dma source(%arg0 : memref<8x32x256xf32, #tpu.memory_space<any>>) target(%arg4 : memref<8x32x256xf32, #tpu.memory_space<any>>) target_semaphore(%1 : memref<!tpu.dma_semaphore, #tpu.memory_space<semaphore_mem>>)
    %c1_i32 = arith.constant 1 : i32
    %2 = tpu.memref_slice %arg8[%c1_i32] : memref<4x!tpu.dma_semaphore, #tpu.memory_space<semaphore_mem>> -> memref<1x!tpu.dma_semaphore, #tpu.memory_space<semaphore_mem>>
    %3 = tpu.memref_squeeze %2 : memref<1x!tpu.dma_semaphore, #tpu.memory_space<semaphore_mem>> -> memref<!tpu.dma_semaphore, #tpu.memory_space<semaphore_mem>>
    tpu.enqueue_dma source(%arg1 : memref<2x4x16x16xf32, #tpu.memory_space<any>>) target(%arg5 : memref<2x4x16x16xf32, #tpu.memory_space<any>>) target_semaphore(%3 : memref<!tpu.dma_semaphore, #tpu.memory_space<semaphore_mem>>)
    %c2_i32 = arith.constant 2 : i32
    %4 = tpu.memref_slice %arg8[%c2_i32] : memref<4x!tpu.dma_semaphore, #tpu.memory_space<semaphore_mem>> -> memref<1x!tpu.dma_semaphore, #tpu.memory_space<semaphore_mem>>
    %5 = tpu.memref_squeeze %4 : memref<1x!tpu.dma_semaphore, #tpu.memory_space<semaphore_mem>> -> memref<!tpu.dma_semaphore, #tpu.memory_space<semaphore_mem>>
    tpu.enqueue_dma source(%arg2 : memref<4x16x128xbf16, #tpu.memory_space<any>>) target(%arg6 : memref<4x16x128xbf16, #tpu.memory_space<any>>) target_semaphore(%5 : memref<!tpu.dma_semaphore, #tpu.memory_space<semaphore_mem>>)
    %c3_i32 = arith.constant 3 : i32
    %6 = tpu.memref_slice %arg8[%c3_i32] : memref<4x!tpu.dma_semaphore, #tpu.memory_space<semaphore_mem>> -> memref<1x!tpu.dma_semaphore, #tpu.memory_space<semaphore_mem>>
    %7 = tpu.memref_squeeze %6 : memref<1x!tpu.dma_semaphore, #tpu.memory_space<semaphore_mem>> -> memref<!tpu.dma_semaphore, #tpu.memory_space<semaphore_mem>>
    tpu.enqueue_dma source(%arg3 : memref<2x4x16x16xf32, #tpu.memory_space<any>>) target(%arg7 : memref<2x4x16x16xf32, #tpu.memory_space<any>>) target_semaphore(%7 : memref<!tpu.dma_semaphore, #tpu.memory_space<semaphore_mem>>)
    %c0_i32_0 = arith.constant 0 : i32
    %8 = tpu.memref_slice %arg8[%c0_i32_0] : memref<4x!tpu.dma_semaphore, #tpu.memory_space<semaphore_mem>> -> memref<1x!tpu.dma_semaphore, #tpu.memory_space<semaphore_mem>>
    %9 = tpu.memref_squeeze %8 : memref<1x!tpu.dma_semaphore, #tpu.memory_space<semaphore_mem>> -> memref<!tpu.dma_semaphore, #tpu.memory_space<semaphore_mem>>
    tpu.wait_dma2 semaphore(%9 : memref<!tpu.dma_semaphore, #tpu.memory_space<semaphore_mem>>) src(%arg0 : memref<8x32x256xf32, #tpu.memory_space<any>>) dst(%arg4 : memref<8x32x256xf32, #tpu.memory_space<any>>)
    %c1_i32_1 = arith.constant 1 : i32
    %10 = tpu.memref_slice %arg8[%c1_i32_1] : memref<4x!tpu.dma_semaphore, #tpu.memory_space<semaphore_mem>> -> memref<1x!tpu.dma_semaphore, #tpu.memory_space<semaphore_mem>>
    %11 = tpu.memref_squeeze %10 : memref<1x!tpu.dma_semaphore, #tpu.memory_space<semaphore_mem>> -> memref<!tpu.dma_semaphore, #tpu.memory_space<semaphore_mem>>
    tpu.wait_dma2 semaphore(%11 : memref<!tpu.dma_semaphore, #tpu.memory_space<semaphore_mem>>) src(%arg1 : memref<2x4x16x16xf32, #tpu.memory_space<any>>) dst(%arg5 : memref<2x4x16x16xf32, #tpu.memory_space<any>>)
    %c2_i32_2 = arith.constant 2 : i32
    %12 = tpu.memref_slice %arg8[%c2_i32_2] : memref<4x!tpu.dma_semaphore, #tpu.memory_space<semaphore_mem>> -> memref<1x!tpu.dma_semaphore, #tpu.memory_space<semaphore_mem>>
    %13 = tpu.memref_squeeze %12 : memref<1x!tpu.dma_semaphore, #tpu.memory_space<semaphore_mem>> -> memref<!tpu.dma_semaphore, #tpu.memory_space<semaphore_mem>>
    tpu.wait_dma2 semaphore(%13 : memref<!tpu.dma_semaphore, #tpu.memory_space<semaphore_mem>>) src(%arg2 : memref<4x16x128xbf16, #tpu.memory_space<any>>) dst(%arg6 : memref<4x16x128xbf16, #tpu.memory_space<any>>)
    %c3_i32_3 = arith.constant 3 : i32
    %14 = tpu.memref_slice %arg8[%c3_i32_3] : memref<4x!tpu.dma_semaphore, #tpu.memory_space<semaphore_mem>> -> memref<1x!tpu.dma_semaphore, #tpu.memory_space<semaphore_mem>>
    %15 = tpu.memref_squeeze %14 : memref<1x!tpu.dma_semaphore, #tpu.memory_space<semaphore_mem>> -> memref<!tpu.dma_semaphore, #tpu.memory_space<semaphore_mem>>
    tpu.wait_dma2 semaphore(%15 : memref<!tpu.dma_semaphore, #tpu.memory_space<semaphore_mem>>) src(%arg3 : memref<2x4x16x16xf32, #tpu.memory_space<any>>) dst(%arg7 : memref<2x4x16x16xf32, #tpu.memory_space<any>>)
    return
  }
}

</mosaic_0001>

<llo_original>
// kernel: tpu_custom_call.1
$region0: #{tpu_custom_call.1}
  #allocation0 [shape = 'u32[]', space=smem, size = 0x4, offset = 0x4, fixed_abs, tag = 'smem constant byte address 0x4 - core index']
  #allocation1 [shape = 'u32[72,128]{1,0:T(1,128)}', space=vmem, size = 0x9000, scoped, tag = 'internal scratch']
  #allocation2 [shape = 's32[4]{0}', space=sflag, size = 0x10, scoped, tag = 'scratch operand']
  #allocation3 [shape = 's32[]', space=sflag, size = 0x4, offset = 0, fixed_abs, tag = 'sflag constant byte address 0x0 - dummy sync flag']
  #allocation4 [shape = 'u32[0]{0}', space=smem, size = 0, offset = 0, fixed_abs, tag = 'smem constant byte address 0x0 - null']
  #allocation5 [shape = 's32[]', space=sflag, size = 0x4, offset = 0, fixed_abs, tag = 'sflag constant byte address 0x0 - dummy sync flag']
  #allocation6 [shape = 'u32[0]{0}', space=smem, size = 0, offset = 0, fixed_abs, tag = 'smem constant byte address 0x0 - null']
  #allocation7 [shape = 's32[]', space=sflag, size = 0x4, offset = 0, fixed_abs, tag = 'sflag constant byte address 0x0 - dummy sync flag']
  #allocation8 [shape = 'u32[0]{0}', space=smem, size = 0, offset = 0, fixed_abs, tag = 'smem constant byte address 0x0 - null']
  #allocation9 [shape = 's32[]', space=sflag, size = 0x4, offset = 0, fixed_abs, tag = 'sflag constant byte address 0x0 - dummy sync flag']
  #allocation10 [shape = 'u32[0]{0}', space=smem, size = 0, offset = 0, fixed_abs, tag = 'smem constant byte address 0x0 - null']
  %s0 = inlined_call_operand.hbm [shape: f32[8,32,256], index: 0, kind: input, shape index: {}]
  %s1 = inlined_call_operand.hbm [shape: f32[2,4,16,16], index: 1, kind: input, shape index: {}]
  %s2 = inlined_call_operand.hbm [shape: bf16[4,16,128], index: 2, kind: input, shape index: {}]
  %s3 = inlined_call_operand.hbm [shape: f32[2,4,16,16], index: 3, kind: input, shape index: {}]
  %s4 = inlined_call_operand.hbm [shape: f32[8,32,256], index: 4, kind: output, shape index: {0}]
  %s5 = inlined_call_operand.hbm [shape: f32[2,4,16,16], index: 5, kind: output, shape index: {1}]
  %s6 = inlined_call_operand.hbm [shape: bf16[4,16,128], index: 6, kind: output, shape index: {2}]
  %s7 = inlined_call_operand.hbm [shape: f32[2,4,16,16], index: 7, kind: output, shape index: {3}]
  %8 = xla_tuple %s4, %s5, %s6, %s7
  %s9 = sld [smem:[#allocation0]]
  $region2: #{tpu_custom_call.1} parent=0
    _
  %s11 = ssub.s32 1, %s9
  %s12 = scalar_select 0, %s11, %s9
  %s14 = sshll.u32 1, 14
  %s15 = sxor.u32 4294967295, %s14
  %s17 = sshll.u32 %s0, 4
  %s18 = int_to_ptr.hbm [resolvable:$true] %s17
  %s19 = sshll.u32 %s4, 4
  %s20 = int_to_ptr.hbm [resolvable:$true] %s19
  %23 = dma.general %s18, 8192, %s20, [#allocation2], [#allocation3], [#allocation4], 0, 0
  %s24 = scalar_lea.sflag [#allocation2], 1
  %s26 = sshll.u32 1, 14
  %s27 = sxor.u32 4294967295, %s26
  %s29 = sshll.u32 %s1, 4
  %s30 = int_to_ptr.hbm [resolvable:$true] %s29
  %s31 = sshll.u32 %s5, 4
  %s32 = int_to_ptr.hbm [resolvable:$true] %s31
  %35 = dma.general %s30, 2048, %s32, %s24, [#allocation5], [#allocation6], 0, 0
  %s36 = scalar_lea.sflag [#allocation2], 2
  %s38 = sshll.u32 1, 14
  %s39 = sxor.u32 4294967295, %s38
  %s41 = sshll.u32 %s2, 4
  %s42 = int_to_ptr.hbm [resolvable:$true] %s41
  %s43 = sshll.u32 %s6, 4
  %s44 = int_to_ptr.hbm [resolvable:$true] %s43
  %47 = dma.general %s42, 512, %s44, %s36, [#allocation7], [#allocation8], 0, 0
  %s48 = scalar_lea.sflag [#allocation2], 3
  %s50 = sshll.u32 1, 14
  %s51 = sxor.u32 4294967295, %s50
  %s53 = sshll.u32 %s3, 4
  %s54 = int_to_ptr.hbm [resolvable:$true] %s53
  %s55 = sshll.u32 %s7, 4
  %s56 = int_to_ptr.hbm [resolvable:$true] %s55
  %59 = dma.general %s54, 2048, %s56, %s48, [#allocation9], [#allocation10], 0, 0
  %s60 = smul.u32 8, 8
  %s61 = smul.u32 %s60, 4
  %s62 = smul.u32 %s61, 2
  %s63 = sshll.u32 %s62, 4
  %64 = dma.done [#allocation2], %s63
  %s65 = smul.u32 2, 4
  %s66 = smul.u32 %s65, 16
  %s67 = smul.u32 %s66, 1
  %s68 = sshll.u32 %s67, 4
  %69 = dma.done %s24, %s68
  %s70 = smul.u32 4, 4
  %s71 = smul.u32 %s70, 2
  %s72 = smul.u32 %s71, 1
  %s73 = sshll.u32 %s72, 4
  %74 = dma.done %s36, %s73
  %s75 = sshll.u32 %s67, 4
  %76 = dma.done %s48, %s75
  %77 = vsyncmov [#allocation2]
  %s78 = vpop.sfrf %77
  %p79 = scmp.eq.s32.totalorder %s78, 0
  %p80 = pneg %p79
  %82 = shalt.err (%p80)
  %s83 = scalar_lea.sflag [#allocation2], 1
  %84 = vsyncmov %s83
  %s85 = vpop.sfrf %84
  %p86 = scmp.eq.s32.totalorder %s85, 0
  %p87 = pneg %p86
  %89 = shalt.err (%p87)
  %s90 = scalar_lea.sflag [#allocation2], 2
  %91 = vsyncmov %s90
  %s92 = vpop.sfrf %91
  %p93 = scmp.eq.s32.totalorder %s92, 0
  %p94 = pneg %p93
  %96 = shalt.err (%p94)
  %s97 = scalar_lea.sflag [#allocation2], 3
  %98 = vsyncmov %s97
  %s99 = vpop.sfrf %98
  %p100 = scmp.eq.s32.totalorder %s99, 0
  %p101 = pneg %p100
  %103 = shalt.err (%p101)

</llo_original>
